<compile_context>
chip_gen: v7x
topology: tpu7x:2x2x1
jax: 0.10.0
libtpu: 0.0.40
codegen_flags: <defaults>
</compile_context>

<pallas_src>
import jax
import jax.numpy as jnp
from jax.experimental import pallas as pl
from jax.experimental.pallas import tpu as pltpu


def _round_up(x, m):
    return ((x + m - 1) // m) * m


def _single_target_attention_kernel(states_ref, w_ref, b_ref,
                                    weighted_ref, alpha_ref,
                                    m_ref, l_ref, acc_ref, logit_ref):
    # states_ref  : (TS, TB, D) VMEM block, native (S, B, D) layout
    # w_ref       : (1, D)      VMEM weight row (constant index -> resident)
    # b_ref       : (1, 1)      SMEM scalar bias
    # weighted_ref: (TB, D)     VMEM output block (written at last S chunk)
    # alpha_ref   : (TB, S)     VMEM output block, lane-dense over S
    # m_ref, l_ref: (TB, 1) f32 running max / running denominator
    # acc_ref     : (TB, D) f32 running un-normalized weighted sum
    # logit_ref   : (S, TB) f32 staged raw logits (normalized in the epilogue)
    s_idx = pl.program_id(1)
    num_s = pl.num_programs(1)
    ts = states_ref.shape[0]

    @pl.when(s_idx == 0)
    def _init():
        m_ref[...] = jnp.full_like(m_ref, -jnp.inf)
        l_ref[...] = jnp.zeros_like(l_ref)
        acc_ref[...] = jnp.zeros_like(acc_ref)

    x = states_ref[...].astype(jnp.float32)                    # (TS, TB, D)
    w = w_ref[...].astype(jnp.float32)                         # (1, D)

    # logits[s, b] = <x[s, b, :], w> + bias   (VPU multiply + lane reduce;
    # avoids an N=1 MXU matmul against a lane-sparse (D, 1) operand).
    logits_sb = jnp.sum(x * w, axis=-1) + b_ref[0, 0]          # (TS, TB)

    # TODO(synk): optional `mask` (masked_fill_ with -inf before softmax) is
    # not implemented; the module default has self.mask = None.

    # Stage raw logits; they get normalized only once the global max and
    # denominator over the whole sequence are known (epilogue).
    off = pl.multiple_of(s_idx * ts, ts)
    logit_ref[pl.ds(off, ts), :] = logits_sb

    # Online (flash-style) softmax state update, lane-dense over S so the
    # max/exp/sum chain keeps full lane occupancy even for small D.  The
    # (TS, TB) <-> (TB, TS) transposes are tiny XLU ops hidden under HBM.
    logits_bs = logits_sb.T                                    # (TB, TS)
    m_prev = m_ref[...]                                        # (TB, 1)
    m_new = jnp.maximum(m_prev, jnp.max(logits_bs, axis=-1, keepdims=True))
    scale = jnp.exp(m_prev - m_new)                            # (TB, 1)
    e_bs = jnp.exp(logits_bs - m_new)                          # (TB, TS)
    l_ref[...] = l_ref[...] * scale + jnp.sum(e_bs, axis=-1, keepdims=True)
    # acc[b, d] = acc[b, d]*scale + sum_s e[s, b] * x[s, b, d]
    # (VPU broadcast-multiply + reduce over the chunk's S rows.)
    e_sb1 = e_bs.T[:, :, None]                                 # (TS, TB, 1)
    acc_ref[...] = acc_ref[...] * scale + jnp.sum(e_sb1 * x, axis=0)
    m_ref[...] = m_new

    @pl.when(s_idx == num_s - 1)
    def _finalize():
        # Exact reciprocal: the divide is fully hidden under HBM traffic.
        inv_l = pl.reciprocal(l_ref[...], approx=False)        # (TB, 1)
        weighted_ref[...] = (acc_ref[...] * inv_l).astype(weighted_ref.dtype)
        logits_all = logit_ref[...].T                          # (TB, S)
        alpha_ref[...] = (jnp.exp(logits_all - m_ref[...]) * inv_l
                          ).astype(alpha_ref.dtype)


def _vmem_capacity_bytes():
    """Physical VMEM of the current generation; conservative if unknown."""
    try:
        return int(pltpu.get_tpu_info().vmem_capacity_bytes)
    except Exception:
        return 64 << 20   # assume the smallest (v7x-sized) VMEM


def _choose_tiles(S, B, D, in_itemsize, budget_bytes, prefer_even_steps):
    """Pick (TB, TS): batch tile and sequence chunk.

    The states block dominates VMEM; its per-element cost is counted as
    (double-buffered input + f32 upcast + f32 product temporary).  TB is
    rounded up to the sublane quantum (8 for 4-byte, 16 for 2-byte dtypes)
    and D padded to 128 lanes, so sub-quantum batches don't over-commit."""
    sub = 8 if in_itemsize >= 4 else 16
    lane_d = _round_up(D, 128)
    bytes_per_elem = 2 * in_itemsize + 8

    def block_bytes(tb, ts):
        return ts * _round_up(tb, sub) * lane_d * bytes_per_elem

    tb_cands = sorted(t for t in range(1, B + 1)
                      if B % t == 0 and (t == B or t % sub == 0))

    fitting = [t for t in tb_cands if block_bytes(t, S) <= budget_bytes]
    if fitting:
        if prefer_even_steps:
            # v7x-like (2 TensorCores): the batch axis is the only megacore
            # sharding -> prefer an even step count (>=4 if it still fits);
            # within that, take the largest tile (longer contiguous DMAs).
            even4 = [t for t in fitting if (B // t) >= 4 and (B // t) % 2 == 0]
            even2 = [t for t in fitting if (B // t) >= 2 and (B // t) % 2 == 0]
            pool = even4 or even2 or fitting
            return max(pool), S
        # Single-TC parts (v5e/v6e): one maximal resident tile is fastest.
        return max(fitting), S

    # Full sequence does not fit: S-tiled online-softmax path.  Smallest
    # batch tile, largest sequence chunk that fits (prefer multiples of 8
    # rows so the staged-logit store stays sublane aligned).
    tb = tb_cands[0]
    ts_cands = [t for t in range(S, 0, -1) if S % t == 0]
    aligned = [t for t in ts_cands if t % 8 == 0]
    for ts in (aligned + ts_cands):
        if block_bytes(tb, ts) <= budget_bytes:
            return tb, ts
    return tb, 1   # 1-row chunks: minimum possible footprint


def _vmem_limit_bytes(S, B, D, TB, TS, in_itemsize, out_itemsize, cap_bytes):
    """Declared scoped-VMEM, padding-aware, clamped to the generation cap."""
    sub = 8 if in_itemsize >= 4 else 16
    tbp = _round_up(TB, sub)
    dp = _round_up(D, 128)
    sp = _round_up(S, 128)
    states = 2 * TS * tbp * dp * in_itemsize        # double-buffered input
    temps = 2 * TS * tbp * dp * 4                   # f32 upcast + product temp
    outs = 2 * tbp * dp * out_itemsize + 2 * tbp * sp * out_itemsize
    scratch = (tbp * dp + sp * _round_up(TB, 8) + 2 * _round_up(TB, 8) * 128) * 4
    weight = 2 * dp * 4
    total = states + temps + outs + scratch + weight + (2 << 20)  # headroom
    return int(min(cap_bytes, max(32 << 20, total)))


def single_target_attention(states_sbd, weight, bias, *, out_dtype=None,
                            _force_tiles=None):
    """states_sbd: (seq_len, batch, input_size), float32 or bfloat16.
    weight: (1, input_size) (nn.Linear weight), bias: (1,).
    Returns (weighted_states (batch, input_size), alpha (seq_len, batch, 1)),
    both in `out_dtype` (default: the states dtype)."""
    S, B, D = states_sbd.shape
    in_dtype = states_sbd.dtype
    out_dtype = in_dtype if out_dtype is None else jnp.dtype(out_dtype)
    in_itemsize = jnp.dtype(in_dtype).itemsize
    out_itemsize = jnp.dtype(out_dtype).itemsize

    # Generation-aware VMEM budget: 128 MiB parts (v5e/v6e, 1 TC) get a large
    # limit and a single maximal tile; 64 MiB parts (v7x-like, 2 TCs) get a
    # tighter cap and an even-step batch grid for megacore balance.
    vmem_cap = _vmem_capacity_bytes()
    big_vmem = vmem_cap >= (100 << 20)
    limit_cap = (110 << 20) if big_vmem else (50 << 20)
    states_budget = limit_cap - (6 << 20)

    if _force_tiles is not None:
        TB, TS = _force_tiles
    else:
        TB, TS = _choose_tiles(S, B, D, in_itemsize, states_budget,
                               prefer_even_steps=not big_vmem)

    w_row = jnp.asarray(weight, jnp.float32).reshape(1, D)   # lane-dense row
    b_11 = jnp.asarray(bias, jnp.float32).reshape(1, 1)      # SMEM scalar

    vmem_limit = _vmem_limit_bytes(S, B, D, TB, TS, in_itemsize, out_itemsize,
                                   limit_cap)

    weighted_bd, alpha_bs = pl.pallas_call(
        _single_target_attention_kernel,
        out_shape=(
            jax.ShapeDtypeStruct((B, D), out_dtype),
            jax.ShapeDtypeStruct((B, S), out_dtype),
        ),
        grid_spec=pltpu.PrefetchScalarGridSpec(
            num_scalar_prefetch=0,
            grid=(B // TB, S // TS),          # reduction (S) axis last
            in_specs=[
                # states in native (S, B, D) layout -- no wrapper transpose.
                pl.BlockSpec((TS, TB, D), lambda b, s: (s, b, 0)),
                # weight row: constant block index => stays VMEM-resident.
                pl.BlockSpec((1, D), lambda b, s: (0, 0)),
                # scalar bias in SMEM.
                pl.BlockSpec(memory_space=pltpu.MemorySpace.SMEM),
            ],
            out_specs=[
                # Constant S block index => resident across the S chunks.
                pl.BlockSpec((TB, D), lambda b, s: (b, 0)),   # weighted states
                pl.BlockSpec((TB, S), lambda b, s: (b, 0)),   # alpha, lane-dense
            ],
            scratch_shapes=[
                pltpu.VMEM((TB, 1), jnp.float32),   # running max
                pltpu.VMEM((TB, 1), jnp.float32),   # running denominator
                pltpu.VMEM((TB, D), jnp.float32),   # un-normalized weighted sum
                pltpu.VMEM((S, TB), jnp.float32),   # staged raw logits
            ],
        ),
        compiler_params=pltpu.CompilerParams(
            dimension_semantics=("parallel", "arbitrary"),
            vmem_limit_bytes=vmem_limit,
        ),
    )(states_sbd, w_row, b_11)

    # PyTorch returns alpha as (S, B, 1); this transpose touches only S*B
    # elements (negligible vs. the S*B*D states traffic).
    alpha = jnp.transpose(alpha_bs, (1, 0))[:, :, None]
    return weighted_bd, alpha


def _reference(states_sbd, weight, bias):
    # Pure-JAX reference mirroring the PyTorch forward, f32 throughout.
    logits = jnp.sum(states_sbd * weight.reshape(1, 1, -1), axis=-1,
                     keepdims=True) + bias.reshape(1, 1, 1)        # (S, B, 1)
    alpha = jax.nn.softmax(logits, axis=0)
    weighted = jnp.sum(alpha * states_sbd, axis=0)                  # (B, D)
    return weighted, alpha


if __name__ == "__main__":
    key = jax.random.PRNGKey(0)
    k1, k2, k3, k4, k5, k6 = jax.random.split(key, 6)

    # Case 1: module-sized small shapes (TB == B, single grid step).
    S0, B0, D0 = 8, 2, 32
    states = jax.random.normal(k1, (S0, B0, D0), dtype=jnp.float32)
    weight = jax.random.normal(k2, (1, D0), dtype=jnp.float32) * 0.1
    bias = jax.random.normal(k3, (1,), dtype=jnp.float32) * 0.1

    w_out, a_out = jax.block_until_ready(
        single_target_attention(states, weight, bias))
    ref_w, ref_a = _reference(states, weight, bias)
    assert w_out.shape == (B0, D0) and a_out.shape == (S0, B0, 1)
    assert jnp.allclose(w_out, ref_w, atol=1e-5, rtol=1e-5)
    assert jnp.allclose(a_out, ref_a, atol=1e-5, rtol=1e-5)

    # Case 2: forced batch + sequence tiling -> exercises the S-tiled
    # online-softmax accumulation path (grid (2, 4)) on any generation.
    S1, B1, D1 = 32, 16, 128
    states1 = jax.random.normal(k4, (S1, B1, D1), dtype=jnp.float32)
    weight1 = jax.random.normal(k5, (1, D1), dtype=jnp.float32) * 0.1
    bias1 = jax.random.normal(k6, (1,), dtype=jnp.float32) * 0.1
    w1, a1 = jax.block_until_ready(
        single_target_attention(states1, weight1, bias1, _force_tiles=(8, 8)))
    ref_w1, ref_a1 = _reference(states1, weight1, bias1)
    assert w1.shape == (B1, D1) and a1.shape == (S1, B1, 1)
    assert jnp.allclose(w1, ref_w1, atol=1e-4, rtol=1e-4)
    assert jnp.allclose(a1, ref_a1, atol=1e-5, rtol=1e-5)

    # Case 3: bf16 states path (halves HBM traffic; f32 accumulate in-kernel).
    S2, B2, D2 = 16, 8, 64
    states2 = jax.random.normal(k4, (S2, B2, D2), dtype=jnp.float32)
    states2_bf = states2.astype(jnp.bfloat16)
    weight2 = jax.random.normal(k5, (1, D2), dtype=jnp.float32) * 0.1
    bias2 = jax.random.normal(k6, (1,), dtype=jnp.float32) * 0.1
    w2, a2 = jax.block_until_ready(
        single_target_attention(states2_bf, weight2, bias2))
    ref_w2, ref_a2 = _reference(states2_bf.astype(jnp.float32), weight2, bias2)
    assert w2.dtype == jnp.bfloat16 and a2.dtype == jnp.bfloat16
    assert w2.shape == (B2, D2) and a2.shape == (S2, B2, 1)
    assert jnp.allclose(w2.astype(jnp.float32), ref_w2, atol=3e-2, rtol=3e-2)
    assert jnp.allclose(a2.astype(jnp.float32), ref_a2, atol=5e-3, rtol=5e-3)

    print("KERNEL_OK")
</pallas_src>

<mosaic_0001>
module attributes {stable_mosaic.version = 11 : i64} {
  func.func @_single_target_attention_kernel(%arg0: i32, %arg1: i32, %arg2: memref<8x2x32xf32, #tpu.memory_space<vmem>>, %arg3: memref<1x32xf32, #tpu.memory_space<vmem>>, %arg4: memref<1x1xf32, #tpu.memory_space<smem>>, %arg5: memref<2x32xf32, #tpu.memory_space<vmem>>, %arg6: memref<2x8xf32, #tpu.memory_space<vmem>>, %arg7: memref<2x1xf32, #tpu.memory_space<vmem>>, %arg8: memref<2x1xf32, #tpu.memory_space<vmem>>, %arg9: memref<2x32xf32, #tpu.memory_space<vmem>>, %arg10: memref<8x2xf32, #tpu.memory_space<vmem>>) attributes {dimension_semantics = [#tpu.dimension_semantics<parallel>, #tpu.dimension_semantics<arbitrary>], iteration_bounds = array<i64: 1, 1>, scalar_prefetch = 0 : i64, scratch_operands = 4 : i64, tpu.core_type = #tpu.core_type<tc>, window_params = [{transform_indices = @transform_0, window_bounds = array<i64: 8, 2, 32>}, {pipeline_mode = #tpu.pipeline_mode<synchronous>, transform_indices = @transform_1, window_bounds = array<i64: 1, 32>}, {transform_indices = @transform_2, window_bounds = array<i64: 1, 1>}, {transform_indices = @transform_3, window_bounds = array<i64: 2, 32>}, {transform_indices = @transform_4, window_bounds = array<i64: 2, 8>}]} {
    %c0_i32 = arith.constant 0 : i32
    %0 = arith.cmpi eq, %arg1, %c0_i32 : i32
    %1 = arith.extui %0 : i1 to i32
    %c0_i32_0 = arith.constant 0 : i32
    %2 = arith.cmpi ne, %1, %c0_i32_0 : i32
    scf.if %2 {
      %cst_25 = arith.constant 0xFF800000 : f32
      %46 = vector.broadcast %cst_25 : f32 to vector<2x1xf32>
      %c0_26 = arith.constant 0 : index
      %c0_27 = arith.constant 0 : index
      %47 = vector.load %arg7[%c0_26, %c0_27] : memref<2x1xf32, #tpu.memory_space<vmem>>, vector<2x1xf32>
      tpu.vector_store %arg7[%c0_26, %c0_27], %46 {strides = array<i32>} : memref<2x1xf32, #tpu.memory_space<vmem>>, vector<2x1xf32>,
      %cst_28 = arith.constant 0.000000e+00 : f32
      %48 = vector.broadcast %cst_28 : f32 to vector<2x1xf32>
      %c0_29 = arith.constant 0 : index
      %c0_30 = arith.constant 0 : index
      %49 = vector.load %arg8[%c0_29, %c0_30] : memref<2x1xf32, #tpu.memory_space<vmem>>, vector<2x1xf32>
      tpu.vector_store %arg8[%c0_29, %c0_30], %48 {strides = array<i32>} : memref<2x1xf32, #tpu.memory_space<vmem>>, vector<2x1xf32>,
      %cst_31 = arith.constant 0.000000e+00 : f32
      %50 = vector.broadcast %cst_31 : f32 to vector<2x32xf32>
      %c0_32 = arith.constant 0 : index
      %c0_33 = arith.constant 0 : index
      %51 = vector.load %arg9[%c0_32, %c0_33] : memref<2x32xf32, #tpu.memory_space<vmem>>, vector<2x32xf32>
      tpu.vector_store %arg9[%c0_32, %c0_33], %50 {strides = array<i32>} : memref<2x32xf32, #tpu.memory_space<vmem>>, vector<2x32xf32>,
    } else {
    }
    %c0 = arith.constant 0 : index
    %c0_1 = arith.constant 0 : index
    %c0_2 = arith.constant 0 : index
    %3 = vector.load %arg2[%c0, %c0_1, %c0_2] : memref<8x2x32xf32, #tpu.memory_space<vmem>>, vector<8x2x32xf32>
    %c0_3 = arith.constant 0 : index
    %c0_4 = arith.constant 0 : index
    %4 = vector.load %arg3[%c0_3, %c0_4] : memref<1x32xf32, #tpu.memory_space<vmem>>, vector<1x32xf32>
    %5 = vector.shape_cast %4 : vector<1x32xf32> to vector<1x1x32xf32>
    %6 = vector.broadcast %5 : vector<1x1x32xf32> to vector<8x2x32xf32>
    %7 = arith.mulf %3, %6 : vector<8x2x32xf32>
    %cst = arith.constant dense<0.000000e+00> : vector<8x2xf32>
    %8 = vector.multi_reduction <add>, %7, %cst [2] : vector<8x2x32xf32> to vector<8x2xf32>
    %c0_5 = arith.constant 0 : index
    %c0_6 = arith.constant 0 : index
    %9 = memref.load %arg4[%c0_5, %c0_6] : memref<1x1xf32, #tpu.memory_space<smem>>
    %10 = vector.broadcast %9 : f32 to vector<8x2xf32>
    %11 = arith.addf %8, %10 : vector<8x2xf32>
    %c8_i32 = arith.constant 8 : i32
    %12 = arith.muli %arg1, %c8_i32 : i32
    %13 = tpu.assume_multiple %12, 8 : i32
    %14 = arith.index_cast %13 : i32 to index
    %c0_7 = arith.constant 0 : index
    %15 = vector.load %arg10[%14, %c0_7] : memref<8x2xf32, #tpu.memory_space<vmem>>, vector<8x2xf32>
    tpu.vector_store %arg10[%14, %c0_7], %11 {strides = array<i32>} : memref<8x2xf32, #tpu.memory_space<vmem>>, vector<8x2xf32>,
    %16 = tpu.transpose %11, [1, 0] : vector<8x2xf32> -> vector<2x8xf32>
    %c0_8 = arith.constant 0 : index
    %c0_9 = arith.constant 0 : index
    %17 = vector.load %arg7[%c0_8, %c0_9] : memref<2x1xf32, #tpu.memory_space<vmem>>, vector<2x1xf32>
    %cst_10 = arith.constant dense<0xFF800000> : vector<2xf32>
    %18 = vector.multi_reduction <maximumf>, %16, %cst_10 [1] : vector<2x8xf32> to vector<2xf32>
    %19 = vector.shape_cast %18 : vector<2xf32> to vector<2x1xf32>
    %20 = arith.maximumf %17, %19 : vector<2x1xf32>
    %21 = arith.subf %17, %20 : vector<2x1xf32>
    %22 = math.exp %21 : vector<2x1xf32>
    %23 = vector.broadcast %20 : vector<2x1xf32> to vector<2x8xf32>
    %24 = arith.subf %16, %23 : vector<2x8xf32>
    %25 = math.exp %24 : vector<2x8xf32>
    %c0_11 = arith.constant 0 : index
    %c0_12 = arith.constant 0 : index
    %26 = vector.load %arg8[%c0_11, %c0_12] : memref<2x1xf32, #tpu.memory_space<vmem>>, vector<2x1xf32>
    %27 = arith.mulf %26, %22 : vector<2x1xf32>
    %cst_13 = arith.constant dense<0.000000e+00> : vector<2xf32>
    %28 = vector.multi_reduction <add>, %25, %cst_13 [1] : vector<2x8xf32> to vector<2xf32>
    %29 = vector.shape_cast %28 : vector<2xf32> to vector<2x1xf32>
    %30 = arith.addf %27, %29 : vector<2x1xf32>
    %c0_14 = arith.constant 0 : index
    %c0_15 = arith.constant 0 : index
    %31 = vector.load %arg8[%c0_14, %c0_15] : memref<2x1xf32, #tpu.memory_space<vmem>>, vector<2x1xf32>
    tpu.vector_store %arg8[%c0_14, %c0_15], %30 {strides = array<i32>} : memref<2x1xf32, #tpu.memory_space<vmem>>, vector<2x1xf32>,
    %32 = tpu.transpose %25, [1, 0] : vector<2x8xf32> -> vector<8x2xf32>
    %33 = vector.shape_cast %32 : vector<8x2xf32> to vector<8x2x1xf32>
    %c0_16 = arith.constant 0 : index
    %c0_17 = arith.constant 0 : index
    %34 = vector.load %arg9[%c0_16, %c0_17] : memref<2x32xf32, #tpu.memory_space<vmem>>, vector<2x32xf32>
    %35 = vector.broadcast %22 : vector<2x1xf32> to vector<2x32xf32>
    %36 = arith.mulf %34, %35 : vector<2x32xf32>
    %37 = vector.broadcast %33 : vector<8x2x1xf32> to vector<8x2x32xf32>
    %38 = arith.mulf %37, %3 : vector<8x2x32xf32>
    %cst_18 = arith.constant dense<0.000000e+00> : vector<2x32xf32>
    %39 = vector.multi_reduction <add>, %38, %cst_18 [0] : vector<8x2x32xf32> to vector<2x32xf32>
    %40 = arith.addf %36, %39 : vector<2x32xf32>
    %c0_19 = arith.constant 0 : index
    %c0_20 = arith.constant 0 : index
    %41 = vector.load %arg9[%c0_19, %c0_20] : memref<2x32xf32, #tpu.memory_space<vmem>>, vector<2x32xf32>
    tpu.vector_store %arg9[%c0_19, %c0_20], %40 {strides = array<i32>} : memref<2x32xf32, #tpu.memory_space<vmem>>, vector<2x32xf32>,
    %c0_21 = arith.constant 0 : index
    %c0_22 = arith.constant 0 : index
    %42 = vector.load %arg7[%c0_21, %c0_22] : memref<2x1xf32, #tpu.memory_space<vmem>>, vector<2x1xf32>
    tpu.vector_store %arg7[%c0_21, %c0_22], %20 {strides = array<i32>} : memref<2x1xf32, #tpu.memory_space<vmem>>, vector<2x1xf32>,
    %c0_i32_23 = arith.constant 0 : i32
    %43 = arith.cmpi eq, %arg1, %c0_i32_23 : i32
    %44 = arith.extui %43 : i1 to i32
    %c0_i32_24 = arith.constant 0 : i32
    %45 = arith.cmpi ne, %44, %c0_i32_24 : i32
    scf.if %45 {
      %c0_25 = arith.constant 0 : index
      %c0_26 = arith.constant 0 : index
      %46 = vector.load %arg8[%c0_25, %c0_26] : memref<2x1xf32, #tpu.memory_space<vmem>>, vector<2x1xf32>
      %47 = tpu.reciprocal %46 : vector<2x1xf32> -> vector<2x1xf32>
      %c0_27 = arith.constant 0 : index
      %c0_28 = arith.constant 0 : index
      %48 = vector.load %arg9[%c0_27, %c0_28] : memref<2x32xf32, #tpu.memory_space<vmem>>, vector<2x32xf32>
      %49 = vector.broadcast %47 : vector<2x1xf32> to vector<2x32xf32>
      %50 = arith.mulf %48, %49 : vector<2x32xf32>
      %c0_29 = arith.constant 0 : index
      %c0_30 = arith.constant 0 : index
      %51 = vector.load %arg5[%c0_29, %c0_30] : memref<2x32xf32, #tpu.memory_space<vmem>>, vector<2x32xf32>
      tpu.vector_store %arg5[%c0_29, %c0_30], %50 {strides = array<i32>} : memref<2x32xf32, #tpu.memory_space<vmem>>, vector<2x32xf32>,
      %c0_31 = arith.constant 0 : index
      %c0_32 = arith.constant 0 : index
      %52 = vector.load %arg10[%c0_31, %c0_32] : memref<8x2xf32, #tpu.memory_space<vmem>>, vector<8x2xf32>
      %53 = tpu.transpose %52, [1, 0] : vector<8x2xf32> -> vector<2x8xf32>
      %c0_33 = arith.constant 0 : index
      %c0_34 = arith.constant 0 : index
      %54 = vector.load %arg7[%c0_33, %c0_34] : memref<2x1xf32, #tpu.memory_space<vmem>>, vector<2x1xf32>
      %55 = vector.broadcast %54 : vector<2x1xf32> to vector<2x8xf32>
      %56 = arith.subf %53, %55 : vector<2x8xf32>
      %57 = math.exp %56 : vector<2x8xf32>
      %58 = vector.broadcast %47 : vector<2x1xf32> to vector<2x8xf32>
      %59 = arith.mulf %57, %58 : vector<2x8xf32>
      %c0_35 = arith.constant 0 : index
      %c0_36 = arith.constant 0 : index
      %60 = vector.load %arg6[%c0_35, %c0_36] : memref<2x8xf32, #tpu.memory_space<vmem>>, vector<2x8xf32>
      tpu.vector_store %arg6[%c0_35, %c0_36], %59 {strides = array<i32>} : memref<2x8xf32, #tpu.memory_space<vmem>>, vector<2x8xf32>,
    } else {
    }
    return
  }
  func.func @transform_0(%arg0: i32, %arg1: i32) -> (i32, i32, i32) {
    %c0_i32 = arith.constant 0 : i32
    %c0_i32_0 = arith.constant 0 : i32
    return %arg1, %arg0, %c0_i32 : i32, i32, i32
  }
  func.func @transform_1(%arg0: i32, %arg1: i32) -> (i32, i32) {
    %c0_i32 = arith.constant 0 : i32
    %c0_i32_0 = arith.constant 0 : i32
    %c0_i32_1 = arith.constant 0 : i32
    return %c0_i32, %c0_i32_0 : i32, i32
  }
  func.func @transform_2(%arg0: i32, %arg1: i32) -> (i32, i32) {
    %c0_i32 = arith.constant 0 : i32
    %c0_i32_0 = arith.constant 0 : i32
    %c0_i32_1 = arith.constant 0 : i32
    return %c0_i32, %c0_i32_0 : i32, i32
  }
  func.func @transform_3(%arg0: i32, %arg1: i32) -> (i32, i32) {
    %c0_i32 = arith.constant 0 : i32
    %c0_i32_0 = arith.constant 0 : i32
    return %arg0, %c0_i32 : i32, i32
  }
  func.func @transform_4(%arg0: i32, %arg1: i32) -> (i32, i32) {
    %c0_i32 = arith.constant 0 : i32
    %c0_i32_0 = arith.constant 0 : i32
    return %arg0, %c0_i32 : i32, i32
  }
}

</mosaic_0001>

<llo_original>
// kernel: tpu_custom_call.1
$region0: #{tpu_custom_call.1}
  #allocation0 [shape = 'u32[]', space=smem, size = 0x4, offset = 0x4, fixed_abs, tag = 'smem constant byte address 0x4 - core index']
  #allocation1 [shape = 'u32[144,128]{1,0:T(1,128)}', space=vmem, size = 0x12000, scoped, tag = 'internal scratch']
  #allocation2 [shape = 'f32[2,1]{1,0:T(2,128)}', space=vmem, size = 0x400, scoped, tag = 'scratch operand']
  #allocation3 [shape = 'f32[2,1]{1,0:T(2,128)}', space=vmem, size = 0x400, scoped, tag = 'scratch operand']
  #allocation4 [shape = 'f32[2,32]{1,0:T(2,128)}', space=vmem, size = 0x400, scoped, tag = 'scratch operand']
  #allocation5 [shape = 'f32[8,2]{1,0:T(8,128)}', space=vmem, size = 0x1000, scoped, tag = 'scratch operand']
  #allocation6 [shape = 'f32[1,1]{1,0:T(1,128)S(6)}', space=smem, size = 0x200, scoped, tag = 'scoped memory for tpu_custom_call.1']
  %s0 = inlined_call_operand.hbm [shape: f32[8,2,32], index: 0, kind: input, shape index: {}]
  %s1 = inlined_call_operand.vmem [shape: f32[1,32], index: 1, kind: input, shape index: {}]
  %s2 = inlined_call_operand.<no memory space> [shape: f32[1,1], index: 2, kind: input, shape index: {}]
  %s3 = inlined_call_operand.hbm [shape: f32[2,32], index: 3, kind: output, shape index: {0}]
  %s4 = inlined_call_operand.hbm [shape: f32[2,8], index: 4, kind: output, shape index: {1}]
  %5 = xla_tuple %s3, %s4
  %s6 = sld [smem:[#allocation0]]
  $region42: #{tpu_custom_call.1} parent=0
    _
  %s8 = ssub.s32 1, %s6
  %s9 = scalar_select 0, %s8, %s6
  %10 = sst [smem:[#allocation6]] %s2
  $region1: #{tpu_custom_call.1} parent=0
    #allocation7 [shape = 'u8[8192]{0}', space=vmem, size = 0x2000, scoped, tag = 'input window, operand 0, single buffered']
    #allocation8 [shape = 's32[1]{0}', space=sflag, size = 0x4, scoped, tag = 'scoped memory for tpu_custom_call.1']
    #allocation9 [shape = 's32[1]{0}', space=sflag, size = 0x4, scoped, tag = 'scoped memory for tpu_custom_call.1']
    #allocation10 [shape = 'u8[1024]{0}', space=vmem, size = 0x400, scoped, tag = 'output window, operand 0, single buffered']
    #allocation11 [shape = 'u8[1024]{0}', space=vmem, size = 0x400, scoped, tag = 'output window, operand 1, single buffered']
    #allocation12 [shape = 's32[1]{0}', space=sflag, size = 0x4, scoped, tag = 'scoped memory for tpu_custom_call.1']
    %11 = vsyncpa [#allocation8], 0
    %12 = vsyncpa [#allocation9], 0
    %13 = vsyncpa [#allocation12], 0
    // Predicated region
    $region2: #{tpu_custom_call.1} parent=1 // pred_check
      _
    $region3: #{tpu_custom_call.1} parent=1 // pred_check_branch
      %15 = sbr.rel (0) target = $region5
    $region4: #{tpu_custom_call.1} parent=1 // pred_region
      %s17 = ssub.s32 256, 256
      %18 = vsyncadd [#allocation8], %s17
      %s19 = sshll.u32 [#allocation7], 4
      %s20 = int_to_ptr.vmem [resolvable:$true] %s19
      %25 = dma.hbm_to_vmem [thread:$0]  %s0, 256, %s20, [#allocation8], 32, 32, 2
    $region5: #{tpu_custom_call.1} parent=1 // pred_fallthru
      _
    // Predicated region
    $region6: #{tpu_custom_call.1} parent=1 // pred_check
      _
    $region7: #{tpu_custom_call.1} parent=1 // pred_check_branch
      %27 = sbr.rel (0) target = $region9
    $region8: #{tpu_custom_call.1} parent=1 // pred_region
      _
    $region9: #{tpu_custom_call.1} parent=1 // pred_fallthru
      _
    // Predicated region
    $region10: #{tpu_custom_call.1} parent=1 // pred_check
      _
    $region11: #{tpu_custom_call.1} parent=1 // pred_check_branch
      %29 = sbr.rel (0) target = $region13
    $region12: #{tpu_custom_call.1} parent=1 // pred_region
      _
    $region13: #{tpu_custom_call.1} parent=1 // pred_fallthru
      _
    // Predicated region
    $region14: #{tpu_custom_call.1} parent=1 // pred_check
      _
    $region15: #{tpu_custom_call.1} parent=1 // pred_check_branch
      %31 = sbr.rel (0) target = $region17
    $region16: #{tpu_custom_call.1} parent=1 // pred_region
      %32 = dma.done [#allocation8], 256
    $region17: #{tpu_custom_call.1} parent=1 // pred_fallthru
      _
    %p33 = scmp.eq.s32.totalorder 0, 0
    // Predicated region
    $region18: #{tpu_custom_call.1} parent=1 // pred_check
      %p34 = pneg %p33
    $region19: #{tpu_custom_call.1} parent=1 // pred_check_branch
      %36 = sbr.rel (%p34) target = $region21
    $region20: #{tpu_custom_call.1} parent=1 // pred_region
      %vm37 = vcmask 1024
      %38 = vst.msk [vmem:[#allocation2] sm:$0x3] %vm37, -inf
      %39 = vst.msk [vmem:[#allocation3] sm:$0x3] %vm37, 0.0
      %vm40 = vcmask 254976
      %41 = vst.msk [vmem:[#allocation4] sm:$0x3] %vm40, 0.0
    $region21: #{tpu_custom_call.1} parent=1 // pred_fallthru
      _
    %v42 = vld [vmem:[#allocation7] sm:$0x3]
    %v43 = vld [vmem:[#allocation7 + $0x2] sm:$0x3]
    %v44 = vld [vmem:[#allocation7 + $0x4] sm:$0x3]
    %v45 = vld [vmem:[#allocation7 + $0x6] sm:$0x3]
    %v46 = vld [vmem:[#allocation7 + $0x8] sm:$0x3]
    %v47 = vld [vmem:[#allocation7 + $0xa] sm:$0x3]
    %v48 = vld [vmem:[#allocation7 + $0xc] sm:$0x3]
    %v49 = vld [vmem:[#allocation7 + $0xe] sm:$0x3]
    %v50 = vld [vmem:[%s1] sm:$0x1]
    %v52 = vlaneseq
    %v53 = vshrl.u32 %v52, 7
    %v54 = vsub.s32 0, %v53
    %v55 = vrot.slane %v50, %v54
    %v57 = vmul.f32 %v42, %v55
    %v58 = vmul.f32 %v43, %v55
    %v59 = vmul.f32 %v44, %v55
    %v60 = vmul.f32 %v45, %v55
    %v61 = vmul.f32 %v46, %v55
    %v62 = vmul.f32 %v47, %v55
    %v63 = vmul.f32 %v48, %v55
    %v64 = vmul.f32 %v49, %v55
    %vm65 = vcmask 254976
    %v66 = vsel %vm65, %v57, 0.0
    %67 = vadd.xlane.f32.xlu0 %v66
    %v68 = vpop.xlane.xlu0 %67
    %v69 = vsel %vm65, %v58, 0.0
    %70 = vadd.xlane.f32.xlu0 %v69
    %v71 = vpop.xlane.xlu0 %70
    %v72 = vsel %vm65, %v59, 0.0
    %73 = vadd.xlane.f32.xlu0 %v72
    %v74 = vpop.xlane.xlu0 %73
    %v75 = vsel %vm65, %v60, 0.0
    %76 = vadd.xlane.f32.xlu0 %v75
    %v77 = vpop.xlane.xlu0 %76
    %v78 = vsel %vm65, %v61, 0.0
    %79 = vadd.xlane.f32.xlu0 %v78
    %v80 = vpop.xlane.xlu0 %79
    %v81 = vsel %vm65, %v62, 0.0
    %82 = vadd.xlane.f32.xlu0 %v81
    %v83 = vpop.xlane.xlu0 %82
    %v84 = vsel %vm65, %v63, 0.0
    %85 = vadd.xlane.f32.xlu0 %v84
    %v86 = vpop.xlane.xlu0 %85
    %v87 = vsel %vm65, %v64, 0.0
    %88 = vadd.xlane.f32.xlu0 %v87
    %v89 = vpop.xlane.xlu0 %88
    %s90 = sld [smem:[#allocation6]]
    %v91 = vstv %s90
    %v92 = vadd.f32 %v68, %v91
    %v93 = vadd.f32 %v71, %v91
    %v94 = vadd.f32 %v74, %v91
    %v95 = vadd.f32 %v77, %v91
    %v96 = vadd.f32 %v80, %v91
    %v97 = vadd.f32 %v83, %v91
    %v98 = vadd.f32 %v86, %v91
    %v99 = vadd.f32 %v89, %v91
    %s100 = smul.u32 0, 8
    %v109 = vlaneseq
    %v110 = vand.u32 %v109, 127
    %v111 = vlaneseq
    %v112 = vshrl.u32 %v111, 7
    %v113 = vsub.s32 %v110, %v112
    %v114 = vrot.slane %v92, %v113
    %v115 = vlaneseq
    %v116 = vshrl.u32 %v115, 7
    %v117 = vsub.s32 %v110, %v116
    %v118 = vrot.slane %v93, %v117
    %v119 = vlaneseq
    %v120 = vshrl.u32 %v119, 7
    %v121 = vsub.s32 %v110, %v120
    %v122 = vrot.slane %v94, %v121
    %v123 = vlaneseq
    %v124 = vshrl.u32 %v123, 7
    %v125 = vsub.s32 %v110, %v124
    %v126 = vrot.slane %v95, %v125
    %v127 = vlaneseq
    %v128 = vshrl.u32 %v127, 7
    %v129 = vsub.s32 %v110, %v128
    %v130 = vrot.slane %v96, %v129
    %v131 = vlaneseq
    %v132 = vshrl.u32 %v131, 7
    %v133 = vsub.s32 %v110, %v132
    %v134 = vrot.slane %v97, %v133
    %v135 = vlaneseq
    %v136 = vshrl.u32 %v135, 7
    %v137 = vsub.s32 %v110, %v136
    %v138 = vrot.slane %v98, %v137
    %v139 = vlaneseq
    %v140 = vshrl.u32 %v139, 7
    %v141 = vsub.s32 %v110, %v140
    %v142 = vrot.slane %v99, %v141
    %vm143 = vcmask 1041409
    %v144 = vsel %vm143, %v118, %v114
    %vm145 = vcmask 1042434
    %v146 = vsel %vm145, %v122, %v144
    %vm147 = vcmask 1043459
    %v148 = vsel %vm147, %v126, %v146
    %vm149 = vcmask 1044484
    %v150 = vsel %vm149, %v130, %v148
    %vm151 = vcmask 1045509
    %v152 = vsel %vm151, %v134, %v150
    %vm153 = vcmask 1046534
    %v154 = vsel %vm153, %v138, %v152
    %vm155 = vcmask 1047559
    %v156 = vsel %vm155, %v142, %v154
    %s158 = scalar_lea.vmem [#allocation5], %s100
    %vm159 = vcmask 15360
    %160 = vst.msk [vmem:[%s158] sm:$0xff] %vm159, %v156
    %161 = vxpose.xlu0.b32.start [1/16] %v156, 128
    %162 = vxpose.xlu0.b32.cont [2/16] 0.0, 128
    %163 = vxpose.xlu0.b32.cont [3/16] 0.0, 128
    %164 = vxpose.xlu0.b32.cont [4/16] 0.0, 128
    %165 = vxpose.xlu0.b32.cont [5/16] 0.0, 128
    %166 = vxpose.xlu0.b32.cont [6/16] 0.0, 128
    %167 = vxpose.xlu0.b32.cont [7/16] 0.0, 128
    %168 = vxpose.xlu0.b32.cont [8/16] 0.0, 128
    %169 = vxpose.xlu0.b32.cont [9/16] 0.0, 128
    %170 = vxpose.xlu0.b32.cont [10/16] 0.0, 128
    %171 = vxpose.xlu0.b32.cont [11/16] 0.0, 128
    %172 = vxpose.xlu0.b32.cont [12/16] 0.0, 128
    %173 = vxpose.xlu0.b32.cont [13/16] 0.0, 128
    %174 = vxpose.xlu0.b32.cont [14/16] 0.0, 128
    %175 = vxpose.xlu0.b32.cont [15/16] 0.0, 128
    %176 = vxpose.xlu0.b32.end [16/16] 0.0, 128
    %v177 = vpop.trf.xlu0
    %v178 = vpop.trf.xlu0
    %v179 = vpop.trf.xlu0
    %v180 = vpop.trf.xlu0
    %v181 = vpop.trf.xlu0
    %v182 = vpop.trf.xlu0
    %v183 = vpop.trf.xlu0
    %v184 = vpop.trf.xlu0
    %v185 = vpop.trf.xlu0
    %v186 = vpop.trf.xlu0
    %v187 = vpop.trf.xlu0
    %v188 = vpop.trf.xlu0
    %v189 = vpop.trf.xlu0
    %v190 = vpop.trf.xlu0
    %v191 = vpop.trf.xlu0
    %v192 = vpop.trf.xlu0
    %v193 = vld [vmem:[#allocation2] sm:$0x3]
    %vm194 = vcmask 58368
    %v195 = vsel %vm194, %v177, -inf
    %196 = vmax.xlane.f32.xlu0 %v195
    %v197 = vpop.xlane.xlu0 %196
    %v198 = vmax.f32 %v193, %v197
    %v199 = vsub.f32 %v193, %v198
    %v200 = vmul.f32 %v199, 1.442695
    %v201 = vpow.pop %v200
    %203 = vset.pattern.permute.xlu0 0
    %204 = vperm.xlu0 %203, %v198
    %v205 = vpop.permute.xlu0 %204
    %v207 = vsub.f32 %v177, %v205
    %v208 = vmul.f32 %v207, 1.442695
    %v209 = vpow.pop %v208
    %v210 = vld [vmem:[#allocation3] sm:$0x3]
    %v211 = vmul.f32 %v210, %v201
    %v212 = vsel %vm194, %v209, 0.0
    %213 = vadd.xlane.f32.xlu0 %v212
    %v214 = vpop.xlane.xlu0 %213
    %v215 = vadd.f32 %v211, %v214
    %vm216 = vcmask 1024
    %217 = vst.msk [vmem:[#allocation3] sm:$0x3] %vm216, %v215
    %218 = vxpose.xlu0.b32.start [1/16] %v209, 128
    %219 = vxpose.xlu0.b32.cont [2/16] 0.0, 128
    %220 = vxpose.xlu0.b32.cont [3/16] 0.0, 128
    %221 = vxpose.xlu0.b32.cont [4/16] 0.0, 128
    %222 = vxpose.xlu0.b32.cont [5/16] 0.0, 128
    %223 = vxpose.xlu0.b32.cont [6/16] 0.0, 128
    %224 = vxpose.xlu0.b32.cont [7/16] 0.0, 128
    %225 = vxpose.xlu0.b32.cont [8/16] 0.0, 128
    %226 = vxpose.xlu0.b32.cont [9/16] 0.0, 128
    %227 = vxpose.xlu0.b32.cont [10/16] 0.0, 128
    %228 = vxpose.xlu0.b32.cont [11/16] 0.0, 128
    %229 = vxpose.xlu0.b32.cont [12/16] 0.0, 128
    %230 = vxpose.xlu0.b32.cont [13/16] 0.0, 128
    %231 = vxpose.xlu0.b32.cont [14/16] 0.0, 128
    %232 = vxpose.xlu0.b32.cont [15/16] 0.0, 128
    %233 = vxpose.xlu0.b32.end [16/16] 0.0, 128
    %v234 = vpop.trf.xlu0
    %v235 = vpop.trf.xlu0
    %v236 = vpop.trf.xlu0
    %v237 = vpop.trf.xlu0
    %v238 = vpop.trf.xlu0
    %v239 = vpop.trf.xlu0
    %v240 = vpop.trf.xlu0
    %v241 = vpop.trf.xlu0
    %v242 = vpop.trf.xlu0
    %v243 = vpop.trf.xlu0
    %v244 = vpop.trf.xlu0
    %v245 = vpop.trf.xlu0
    %v246 = vpop.trf.xlu0
    %v247 = vpop.trf.xlu0
    %v248 = vpop.trf.xlu0
    %v249 = vpop.trf.xlu0
    %v250 = vlaneseq
    %v251 = vshrl.u32 %v250, 7
    %v252 = vsub.s32 0, %v251
    %v253 = vrot.slane %v234, %v252
    %255 = vbcast.lane.b32.xlu0 %v253, 256
    %v256 = vpop.permute.xlu0 %255
    %v257 = vlaneseq
    %v258 = vshrl.u32 %v257, 7
    %v259 = vsub.s32 1, %v258
    %v260 = vrot.slane %v234, %v259
    %262 = vbcast.lane.b32.xlu0 %v260, 256
    %v263 = vpop.permute.xlu0 %262
    %v264 = vlaneseq
    %v265 = vshrl.u32 %v264, 7
    %v266 = vsub.s32 2, %v265
    %v267 = vrot.slane %v234, %v266
    %269 = vbcast.lane.b32.xlu0 %v267, 256
    %v270 = vpop.permute.xlu0 %269
    %v271 = vlaneseq
    %v272 = vshrl.u32 %v271, 7
    %v273 = vsub.s32 3, %v272
    %v274 = vrot.slane %v234, %v273
    %276 = vbcast.lane.b32.xlu0 %v274, 256
    %v277 = vpop.permute.xlu0 %276
    %v278 = vlaneseq
    %v279 = vshrl.u32 %v278, 7
    %v280 = vsub.s32 4, %v279
    %v281 = vrot.slane %v234, %v280
    %283 = vbcast.lane.b32.xlu0 %v281, 256
    %v284 = vpop.permute.xlu0 %283
    %v285 = vlaneseq
    %v286 = vshrl.u32 %v285, 7
    %v287 = vsub.s32 5, %v286
    %v288 = vrot.slane %v234, %v287
    %290 = vbcast.lane.b32.xlu0 %v288, 256
    %v291 = vpop.permute.xlu0 %290
    %v292 = vlaneseq
    %v293 = vshrl.u32 %v292, 7
    %v294 = vsub.s32 6, %v293
    %v295 = vrot.slane %v234, %v294
    %297 = vbcast.lane.b32.xlu0 %v295, 256
    %v298 = vpop.permute.xlu0 %297
    %v299 = vlaneseq
    %v300 = vshrl.u32 %v299, 7
    %v301 = vsub.s32 7, %v300
    %v302 = vrot.slane %v234, %v301
    %304 = vbcast.lane.b32.xlu0 %v302, 256
    %v305 = vpop.permute.xlu0 %304
    %v306 = vld [vmem:[#allocation4] sm:$0x3]
    %308 = vset.pattern.permute.xlu0 0
    %309 = vperm.xlu0 %308, %v201
    %v310 = vpop.permute.xlu0 %309
    %v312 = vmul.f32 %v306, %v310
    %v313 = vmul.f32 %v256, %v42
    %v314 = vmul.f32 %v263, %v43
    %v315 = vmul.f32 %v270, %v44
    %v316 = vmul.f32 %v277, %v45
    %v317 = vmul.f32 %v284, %v46
    %v318 = vmul.f32 %v291, %v47
    %v319 = vmul.f32 %v298, %v48
    %v320 = vmul.f32 %v305, %v49
    %v321 = vsel %vm65, %v313, 0.0
    %v322 = vsel %vm65, %v314, 0.0
    %v323 = vadd.f32 %v321, %v322
    %v324 = vsel %vm65, %v315, 0.0
    %v325 = vadd.f32 %v323, %v324
    %v326 = vsel %vm65, %v316, 0.0
    %v327 = vadd.f32 %v325, %v326
    %v328 = vsel %vm65, %v317, 0.0
    %v329 = vadd.f32 %v327, %v328
    %v330 = vsel %vm65, %v318, 0.0
    %v331 = vadd.f32 %v329, %v330
    %v332 = vsel %vm65, %v319, 0.0
    %v333 = vadd.f32 %v331, %v332
    %v334 = vsel %vm65, %v320, 0.0
    %v335 = vadd.f32 %v333, %v334
    %v336 = vadd.f32 %v312, %v335
    %337 = vst.msk [vmem:[#allocation4] sm:$0x3] %vm65, %v336
    %338 = vst.msk [vmem:[#allocation2] sm:$0x3] %vm216, %v198
    // Predicated region
    $region22: #{tpu_custom_call.1} parent=1 // pred_check
      %p339 = pneg %p33
    $region23: #{tpu_custom_call.1} parent=1 // pred_check_branch
      %341 = sbr.rel (%p339) target = $region25
    $region24: #{tpu_custom_call.1} parent=1 // pred_region
      %v342 = vld [vmem:[#allocation3] sm:$0x3]
      %v343 = vrcp.pop %v342
      %v344 = vld [vmem:[#allocation4] sm:$0x3]
      %346 = vset.pattern.permute.xlu0 0
      %347 = vperm.xlu0 %346, %v343
      %v348 = vpop.permute.xlu0 %347
      %v350 = vmul.f32 %v344, %v348
      %351 = vst.msk [vmem:[#allocation10] sm:$0x3] %vm65, %v350
      %v352 = vld [vmem:[#allocation5] sm:$0xff]
      %353 = vxpose.xlu0.b32.start [1/16] %v352, 128
      %354 = vxpose.xlu0.b32.cont [2/16] 0.0, 128
      %355 = vxpose.xlu0.b32.cont [3/16] 0.0, 128
      %356 = vxpose.xlu0.b32.cont [4/16] 0.0, 128
      %357 = vxpose.xlu0.b32.cont [5/16] 0.0, 128
      %358 = vxpose.xlu0.b32.cont [6/16] 0.0, 128
      %359 = vxpose.xlu0.b32.cont [7/16] 0.0, 128
      %360 = vxpose.xlu0.b32.cont [8/16] 0.0, 128
      %361 = vxpose.xlu0.b32.cont [9/16] 0.0, 128
      %362 = vxpose.xlu0.b32.cont [10/16] 0.0, 128
      %363 = vxpose.xlu0.b32.cont [11/16] 0.0, 128
      %364 = vxpose.xlu0.b32.cont [12/16] 0.0, 128
      %365 = vxpose.xlu0.b32.cont [13/16] 0.0, 128
      %366 = vxpose.xlu0.b32.cont [14/16] 0.0, 128
      %367 = vxpose.xlu0.b32.cont [15/16] 0.0, 128
      %368 = vxpose.xlu0.b32.end [16/16] 0.0, 128
      %v369 = vpop.trf.xlu0
      %v370 = vpop.trf.xlu0
      %v371 = vpop.trf.xlu0
      %v372 = vpop.trf.xlu0
      %v373 = vpop.trf.xlu0
      %v374 = vpop.trf.xlu0
      %v375 = vpop.trf.xlu0
      %v376 = vpop.trf.xlu0
      %v377 = vpop.trf.xlu0
      %v378 = vpop.trf.xlu0
      %v379 = vpop.trf.xlu0
      %v380 = vpop.trf.xlu0
      %v381 = vpop.trf.xlu0
      %v382 = vpop.trf.xlu0
      %v383 = vpop.trf.xlu0
      %v384 = vpop.trf.xlu0
      %v385 = vld [vmem:[#allocation2] sm:$0x3]
      %387 = vset.pattern.permute.xlu0 0
      %388 = vperm.xlu0 %387, %v385
      %v389 = vpop.permute.xlu0 %388
      %v391 = vsub.f32 %v369, %v389
      %v392 = vmul.f32 %v391, 1.442695
      %v393 = vpow.pop %v392
      %v394 = vmul.f32 %v393, %v348
      %395 = vst.msk [vmem:[#allocation11] sm:$0x3] %vm194, %v394
    $region25: #{tpu_custom_call.1} parent=1 // pred_fallthru
      _
    // Predicated region
    $region26: #{tpu_custom_call.1} parent=1 // pred_check
      _
    $region27: #{tpu_custom_call.1} parent=1 // pred_check_branch
      %397 = sbr.rel (0) target = $region29
    $region28: #{tpu_custom_call.1} parent=1 // pred_region
      %s399 = ssub.s32 32, 32
      %400 = vsyncadd [#allocation9], %s399
      %s402 = sshll.u32 [#allocation10], 4
      %s403 = int_to_ptr.vmem [resolvable:$true] %s402
      %405 = dma.vmem_to_hbm [thread:$0]  %s403, 32, %s3, [#allocation9]
    $region29: #{tpu_custom_call.1} parent=1 // pred_fallthru
      _
    // Predicated region
    $region30: #{tpu_custom_call.1} parent=1 // pred_check
      _
    $region31: #{tpu_custom_call.1} parent=1 // pred_check_branch
      %407 = sbr.rel (0) target = $region33
    $region32: #{tpu_custom_call.1} parent=1 // pred_region
      %s409 = ssub.s32 32, 32
      %410 = vsyncadd [#allocation12], %s409
      %s412 = sshll.u32 [#allocation11], 4
      %s413 = int_to_ptr.vmem [resolvable:$true] %s412
      %415 = dma.vmem_to_hbm [thread:$0]  %s413, 32, %s4, [#allocation12]
    $region33: #{tpu_custom_call.1} parent=1 // pred_fallthru
      _
    // Predicated region
    $region34: #{tpu_custom_call.1} parent=1 // pred_check
      _
    $region35: #{tpu_custom_call.1} parent=1 // pred_check_branch
      %417 = sbr.rel (0) target = $region37
    $region36: #{tpu_custom_call.1} parent=1 // pred_region
      %418 = dma.done [#allocation9], 32
    $region37: #{tpu_custom_call.1} parent=1 // pred_fallthru
      _
    // Predicated region
    $region38: #{tpu_custom_call.1} parent=1 // pred_check
      _
    $region39: #{tpu_custom_call.1} parent=1 // pred_check_branch
      %420 = sbr.rel (0) target = $region41
    $region40: #{tpu_custom_call.1} parent=1 // pred_region
      %421 = dma.done [#allocation12], 32
    $region41: #{tpu_custom_call.1} parent=1 // pred_fallthru
      _
    %422 = vsyncpa [#allocation8], 1
    %423 = vsyncpa [#allocation9], 1
    %424 = vsyncpa [#allocation12], 1

</llo_original>
